<compile_context>
chip_gen: v7x
topology: tpu7x:2x2x1
jax: 0.10.0
libtpu: 0.0.40
codegen_flags: <defaults>
</compile_context>

<pallas_src>
import functools
import math

import jax
import jax.numpy as jnp
from jax import lax
from jax.experimental import pallas as pl
from jax.experimental.pallas import tpu as pltpu


# ---------------------------------------------------------------------------
# helpers
# ---------------------------------------------------------------------------
def _round_up(x, m):
    return ((x + m - 1) // m) * m


def _pad2(a, shape):
    pr, pc = shape[0] - a.shape[0], shape[1] - a.shape[1]
    if pr == 0 and pc == 0:
        return a
    return jnp.pad(a, ((0, pr), (0, pc)))


def _vmem_limit(est_bytes):
    # default scoped VMEM is 32 MiB; allow growth for big tiles but keep
    # headroom for v7x's 64 MiB physical VMEM.
    return int(max(32 << 20, min(2 * est_bytes + (4 << 20), 48 << 20)))


# ---------------------------------------------------------------------------
# Kernel 1: tiled Linear  y = x @ W^T + b   (inference path)
#   bf16 x / bf16 W_t on the MXU, f32 accumulation directly in the resident
#   output block (bias written once at k == 0).
# ---------------------------------------------------------------------------
def _linear_kernel(x_ref, w_ref, b_ref, o_ref):
    @pl.when(pl.program_id(2) == 0)
    def _():
        o_ref[...] = jnp.broadcast_to(b_ref[...], o_ref.shape)

    o_ref[...] += jnp.dot(x_ref[...], w_ref[...],
                          preferred_element_type=jnp.float32)


def linear_pallas(x, w_t, b, *, tm=256, tn=256, tk=512):
    """x: (B, D_in) f32, w_t: (D_in, D_out) bf16 pre-transposed, b: (D_out,) f32."""
    B, D_in = x.shape
    D_out = w_t.shape[1]

    # 8/128-aligned tiles, clamped to the (padded) problem size.
    tm = min(tm, _round_up(B, 8))
    tn = min(tn, _round_up(D_out, 128))
    tk = min(tk, _round_up(D_in, 128))
    B_pad, N_pad, K_pad = _round_up(B, tm), _round_up(D_out, tn), _round_up(D_in, tk)

    x_p = _pad2(x.astype(jnp.bfloat16), (B_pad, K_pad))
    w_p = _pad2(w_t, (K_pad, N_pad))
    b_p = jnp.zeros((1, N_pad), jnp.float32).at[0, :D_out].set(b)

    grid = (B_pad // tm, N_pad // tn, K_pad // tk)
    est = 2 * (tm * tk * 2 + tk * tn * 2 + tn * 4 + tm * tn * 4)

    out = pl.pallas_call(
        _linear_kernel,
        out_shape=jax.ShapeDtypeStruct((B_pad, N_pad), jnp.float32),
        grid=grid,
        in_specs=[
            pl.BlockSpec((tm, tk), lambda i, j, k: (i, k)),
            pl.BlockSpec((tk, tn), lambda i, j, k: (k, j)),
            pl.BlockSpec((1, tn), lambda i, j, k: (0, j)),
        ],
        out_specs=pl.BlockSpec((tm, tn), lambda i, j, k: (i, j)),
        compiler_params=pltpu.CompilerParams(
            dimension_semantics=("parallel", "parallel", "arbitrary"),
            vmem_limit_bytes=_vmem_limit(est)),
    )(x_p, w_p, b_p)
    return out[:B, :D_out]


# ---------------------------------------------------------------------------
# Kernel 2: fused Linear + cross-entropy (loss path), tiled over (batch, K).
#   logits never round-trip through HBM; scalar loss accumulated in SMEM.
# ---------------------------------------------------------------------------
def _fused_linear_ce_kernel(x_ref, w_ref, b_ref, y_ref, loss_ref, logits_acc,
                            *, actual_b):
    i = pl.program_id(0)          # batch-tile index
    k = pl.program_id(1)          # K reduction index

    @pl.when(k == 0)
    def _():
        logits_acc[...] = jnp.zeros_like(logits_acc)

    logits_acc[...] += jnp.dot(x_ref[...], w_ref[...],
                               preferred_element_type=jnp.float32)

    @pl.when(k == pl.num_programs(1) - 1)
    def _():
        logits = logits_acc[...] + b_ref[...]              # (tm, C) f32
        tm, C = logits.shape

        # numerically stable log-softmax; target logit gathered from the SAME
        # shifted tensor to keep the live (tm, C) intermediates small.
        m = jnp.max(logits, axis=-1, keepdims=True)
        shifted = logits - m
        sum_exp = jnp.sum(jnp.exp(shifted), axis=-1, keepdims=True)
        col = lax.broadcasted_iota(jnp.int32, (tm, C), 1)
        tgt_shifted = jnp.sum(jnp.where(col == y_ref[...], shifted, 0.0),
                              axis=-1, keepdims=True)
        per_row = jnp.log(sum_exp) - tgt_shifted           # (tm, 1) NLL

        # mask rows that only exist because of batch padding
        row = lax.broadcasted_iota(jnp.int32, (tm, 1), 0) + i * tm
        per_row = jnp.where(row < actual_b, per_row, 0.0)
        tile_sum = jnp.sum(per_row)

        @pl.when(i == 0)
        def _():
            loss_ref[0, 0] = 0.0

        loss_ref[0, 0] += tile_sum

        @pl.when(i == pl.num_programs(0) - 1)
        def _():
            loss_ref[0, 0] *= 1.0 / actual_b


def fused_linear_cross_entropy(x, w_t, b, y_int, *, tm=128, tk=512):
    """Mean cross-entropy of (x @ W^T + b) against integer labels y_int."""
    B, D_in = x.shape
    C = w_t.shape[1]

    tm = min(tm, _round_up(B, 8))
    tk = min(tk, _round_up(D_in, 128))
    B_pad, K_pad = _round_up(B, tm), _round_up(D_in, tk)

    x_p = _pad2(x.astype(jnp.bfloat16), (B_pad, K_pad))
    w_p = _pad2(w_t, (K_pad, C))
    b2 = b.reshape(1, C).astype(jnp.float32)
    y_p = jnp.zeros((B_pad, 1), jnp.int32).at[:B, 0].set(y_int.astype(jnp.int32))

    grid = (B_pad // tm, K_pad // tk)
    est = 2 * (tm * tk * 2 + tk * C * 2 + C * 4 + tm * 4) + tm * C * 4
    kernel = functools.partial(_fused_linear_ce_kernel, actual_b=B)

    # TODO(synk): for very large class counts C, additionally tile the C axis
    # with an online log-sum-exp instead of keeping a (tm, C) logits block.
    loss = pl.pallas_call(
        kernel,
        out_shape=jax.ShapeDtypeStruct((1, 1), jnp.float32),
        grid=grid,
        in_specs=[
            pl.BlockSpec((tm, tk), lambda i, k: (i, k)),
            pl.BlockSpec((tk, C), lambda i, k: (k, 0)),
            pl.BlockSpec((1, C), lambda i, k: (0, 0)),
            pl.BlockSpec((tm, 1), lambda i, k: (i, 0)),
        ],
        out_specs=pl.BlockSpec((1, 1), lambda i, k: (0, 0),
                               memory_space=pltpu.MemorySpace.SMEM),
        scratch_shapes=[pltpu.VMEM((tm, C), jnp.float32)],
        compiler_params=pltpu.CompilerParams(
            dimension_semantics=("arbitrary", "arbitrary"),
            vmem_limit_bytes=_vmem_limit(est)),
    )(x_p, w_p, b2, y_p)
    return loss[0, 0]


# ---------------------------------------------------------------------------
# Module-equivalent wrapper:  TorchModel2(input_size).forward(x, y=None)
# ---------------------------------------------------------------------------
class TorchModel2Pallas:
    def __init__(self, input_size, key):
        kw, kb = jax.random.split(key)
        bound = 1.0 / math.sqrt(input_size)
        w_torch_layout = jax.random.uniform(
            kw, (input_size, input_size), jnp.float32, -bound, bound)  # (out, in)
        # pre-transpose once at init and store bf16 so the MXU gets bf16 operands
        self.weight_t = jnp.asarray(w_torch_layout.T).astype(jnp.bfloat16)  # (in, out)
        self.bias = jax.random.uniform(
            kb, (input_size,), jnp.float32, -bound, bound)

    def __call__(self, x, y=None):
        if y is not None:
            y_int = jnp.squeeze(y).astype(jnp.int32)   # mimic y.squeeze().long()
            return fused_linear_cross_entropy(x, self.weight_t, self.bias, y_int)
        return linear_pallas(x, self.weight_t, self.bias)


if __name__ == "__main__":
    key = jax.random.PRNGKey(0)
    k_model, k_x, k_y = jax.random.split(key, 3)

    batch, input_size = 8, 32
    model = TorchModel2Pallas(input_size, k_model)

    x = jax.random.normal(k_x, (batch, input_size), jnp.float32)
    # class labels in [0, input_size), stored as a float column like the torch demo
    y = jax.random.randint(k_y, (batch, 1), 0, input_size).astype(jnp.float32)

    # inference path (tiled linear kernel)
    y_pred = jax.block_until_ready(model(x))

    # training (loss) path (tiled fused linear + cross-entropy kernel)
    loss = jax.block_until_ready(model(x, y))

    assert y_pred.shape == (batch, input_size)
    assert loss.shape == ()
    assert bool(jnp.isfinite(loss))
    print("KERNEL_OK")
</pallas_src>

<mosaic_0001>
module attributes {stable_mosaic.version = 11 : i64} {
  func.func @_linear_kernel(%arg0: i32, %arg1: i32, %arg2: i32, %arg3: memref<8x128xbf16, #tpu.memory_space<vmem>>, %arg4: memref<128x128xbf16, #tpu.memory_space<vmem>>, %arg5: memref<1x128xf32, #tpu.memory_space<vmem>>, %arg6: memref<8x128xf32, #tpu.memory_space<vmem>>) attributes {dimension_semantics = [#tpu.dimension_semantics<parallel>, #tpu.dimension_semantics<parallel>, #tpu.dimension_semantics<arbitrary>], iteration_bounds = array<i64: 1, 1, 1>, scalar_prefetch = 0 : i64, scratch_operands = 0 : i64, tpu.core_type = #tpu.core_type<tc>, window_params = [{transform_indices = @transform_0, window_bounds = array<i64: 8, 128>}, {transform_indices = @transform_1, window_bounds = array<i64: 128, 128>}, {transform_indices = @transform_2, window_bounds = array<i64: 1, 128>}, {transform_indices = @transform_3, window_bounds = array<i64: 8, 128>}]} {
    %c0_i32 = arith.constant 0 : i32
    %0 = arith.cmpi eq, %arg2, %c0_i32 : i32
    %1 = arith.extui %0 : i1 to i32
    %c0_i32_0 = arith.constant 0 : i32
    %2 = arith.cmpi ne, %1, %c0_i32_0 : i32
    scf.if %2 {
      %c0_8 = arith.constant 0 : index
      %c0_9 = arith.constant 0 : index
      %9 = vector.load %arg5[%c0_8, %c0_9] : memref<1x128xf32, #tpu.memory_space<vmem>>, vector<1x128xf32>
      %10 = vector.shape_cast %9 : vector<1x128xf32> to vector<1x128xf32>
      %11 = vector.broadcast %10 : vector<1x128xf32> to vector<8x128xf32>
      %c0_10 = arith.constant 0 : index
      %c0_11 = arith.constant 0 : index
      %12 = vector.load %arg6[%c0_10, %c0_11] : memref<8x128xf32, #tpu.memory_space<vmem>>, vector<8x128xf32>
      tpu.vector_store %arg6[%c0_10, %c0_11], %11 {strides = array<i32>} : memref<8x128xf32, #tpu.memory_space<vmem>>, vector<8x128xf32>,
    } else {
    }
    %c0 = arith.constant 0 : index
    %c0_1 = arith.constant 0 : index
    %3 = vector.load %arg6[%c0, %c0_1] : memref<8x128xf32, #tpu.memory_space<vmem>>, vector<8x128xf32>
    %c0_2 = arith.constant 0 : index
    %c0_3 = arith.constant 0 : index
    %4 = vector.load %arg3[%c0_2, %c0_3] : memref<8x128xbf16, #tpu.memory_space<vmem>>, vector<8x128xbf16>
    %c0_4 = arith.constant 0 : index
    %c0_5 = arith.constant 0 : index
    %5 = vector.load %arg4[%c0_4, %c0_5] : memref<128x128xbf16, #tpu.memory_space<vmem>>, vector<128x128xbf16>
    %cst = arith.constant dense<0.000000e+00> : vector<8x128xf32>
    %6 = tpu.matmul %4, %5, %cst {dimension_numbers = #tpu.dot_dimension_numbers<[1], [0], [0], [1], [0, 0, 1, 1], [], []>} : vector<8x128xbf16>, vector<128x128xbf16>, vector<8x128xf32> -> vector<8x128xf32>
    %7 = arith.addf %3, %6 : vector<8x128xf32>
    %c0_6 = arith.constant 0 : index
    %c0_7 = arith.constant 0 : index
    %8 = vector.load %arg6[%c0_6, %c0_7] : memref<8x128xf32, #tpu.memory_space<vmem>>, vector<8x128xf32>
    tpu.vector_store %arg6[%c0_6, %c0_7], %7 {strides = array<i32>} : memref<8x128xf32, #tpu.memory_space<vmem>>, vector<8x128xf32>,
    return
  }
  func.func @transform_0(%arg0: i32, %arg1: i32, %arg2: i32) -> (i32, i32) {
    %c0_i32 = arith.constant 0 : i32
    return %arg0, %arg2 : i32, i32
  }
  func.func @transform_1(%arg0: i32, %arg1: i32, %arg2: i32) -> (i32, i32) {
    %c0_i32 = arith.constant 0 : i32
    return %arg2, %arg1 : i32, i32
  }
  func.func @transform_2(%arg0: i32, %arg1: i32, %arg2: i32) -> (i32, i32) {
    %c0_i32 = arith.constant 0 : i32
    %c0_i32_0 = arith.constant 0 : i32
    return %c0_i32, %arg1 : i32, i32
  }
  func.func @transform_3(%arg0: i32, %arg1: i32, %arg2: i32) -> (i32, i32) {
    %c0_i32 = arith.constant 0 : i32
    return %arg0, %arg1 : i32, i32
  }
}

</mosaic_0001>

<llo_original>
// kernel: tpu_custom_call.1
$region0: #{tpu_custom_call.1}
  #allocation0 [shape = 'u32[]', space=smem, size = 0x4, offset = 0x4, fixed_abs, tag = 'smem constant byte address 0x4 - core index']
  #allocation1 [shape = 'u32[144,128]{1,0:T(1,128)}', space=vmem, size = 0x12000, scoped, tag = 'internal scratch']
  %s0 = inlined_call_operand.hbm [shape: bf16[8,128], index: 0, kind: input, shape index: {}]
  %s1 = inlined_call_operand.hbm [shape: bf16[128,128], index: 1, kind: input, shape index: {}]
  %s2 = inlined_call_operand.vmem [shape: f32[1,128], index: 2, kind: input, shape index: {}]
  %s3 = inlined_call_operand.hbm [shape: f32[8,128], index: 3, kind: output, shape index: {}]
  %s4 = sld [smem:[#allocation0]]
  $region34: #{tpu_custom_call.1} parent=0
    _
  %s6 = ssub.s32 1, %s4
  %s7 = scalar_select 0, %s6, %s4
  $region1: #{tpu_custom_call.1} parent=0
    #allocation2 [shape = 'u8[2048]{0}', space=vmem, size = 0x800, scoped, tag = 'input window, operand 0, single buffered']
    #allocation3 [shape = 's32[1]{0}', space=sflag, size = 0x4, scoped, tag = 'scoped memory for tpu_custom_call.1']
    #allocation4 [shape = 's32[1]{0}', space=sflag, size = 0x4, scoped, tag = 'scoped memory for tpu_custom_call.1']
    #allocation5 [shape = 'u8[32768]{0}', space=vmem, size = 0x8000, scoped, tag = 'input window, operand 1, single buffered']
    #allocation6 [shape = 's32[1]{0}', space=sflag, size = 0x4, scoped, tag = 'scoped memory for tpu_custom_call.1']
    #allocation7 [shape = 'u8[4096]{0}', space=vmem, size = 0x1000, scoped, tag = 'output window, operand 0, single buffered']
    %8 = vsyncpa [#allocation3], 0
    %9 = vsyncpa [#allocation6], 0
    %10 = vsyncpa [#allocation4], 0
    // Predicated region
    $region2: #{tpu_custom_call.1} parent=1 // pred_check
      _
    $region3: #{tpu_custom_call.1} parent=1 // pred_check_branch
      %12 = sbr.rel (0) target = $region5
    $region4: #{tpu_custom_call.1} parent=1 // pred_region
      %s14 = ssub.s32 64, 64
      %15 = vsyncadd [#allocation3], %s14
      %s17 = sshll.u32 [#allocation2], 4
      %s18 = int_to_ptr.vmem [resolvable:$true] %s17
      %20 = dma.hbm_to_vmem [thread:$0]  %s0, 64, %s18, [#allocation3]
    $region5: #{tpu_custom_call.1} parent=1 // pred_fallthru
      _
    // Predicated region
    $region6: #{tpu_custom_call.1} parent=1 // pred_check
      _
    $region7: #{tpu_custom_call.1} parent=1 // pred_check_branch
      %22 = sbr.rel (0) target = $region9
    $region8: #{tpu_custom_call.1} parent=1 // pred_region
      %s24 = ssub.s32 1024, 1024
      %25 = vsyncadd [#allocation6], %s24
      %s26 = sshll.u32 [#allocation5], 4
      %s27 = int_to_ptr.vmem [resolvable:$true] %s26
      %32 = dma.hbm_to_vmem [thread:$0]  %s1, 1024, %s27, [#allocation6], 64, 64, 4
    $region9: #{tpu_custom_call.1} parent=1 // pred_fallthru
      _
    // Predicated region
    $region10: #{tpu_custom_call.1} parent=1 // pred_check
      _
    $region11: #{tpu_custom_call.1} parent=1 // pred_check_branch
      %34 = sbr.rel (0) target = $region13
    $region12: #{tpu_custom_call.1} parent=1 // pred_region
      _
    $region13: #{tpu_custom_call.1} parent=1 // pred_fallthru
      _
    // Predicated region
    $region14: #{tpu_custom_call.1} parent=1 // pred_check
      _
    $region15: #{tpu_custom_call.1} parent=1 // pred_check_branch
      %36 = sbr.rel (0) target = $region17
    $region16: #{tpu_custom_call.1} parent=1 // pred_region
      %37 = dma.done [#allocation3], 64
    $region17: #{tpu_custom_call.1} parent=1 // pred_fallthru
      _
    // Predicated region
    $region18: #{tpu_custom_call.1} parent=1 // pred_check
      _
    $region19: #{tpu_custom_call.1} parent=1 // pred_check_branch
      %39 = sbr.rel (0) target = $region21
    $region20: #{tpu_custom_call.1} parent=1 // pred_region
      %40 = dma.done [#allocation6], 1024
    $region21: #{tpu_custom_call.1} parent=1 // pred_fallthru
      _
    %p42 = scmp.eq.s32.totalorder 0, 0
    // Predicated region
    $region22: #{tpu_custom_call.1} parent=1 // pred_check
      %p43 = pneg %p42
    $region23: #{tpu_custom_call.1} parent=1 // pred_check_branch
      %45 = sbr.rel (%p43) target = $region25
    $region24: #{tpu_custom_call.1} parent=1 // pred_region
      %v46 = vld [vmem:[%s2] sm:$0x1]
      %v48 = vlaneseq
      %v49 = vshrl.u32 %v48, 7
      %v50 = vsub.s32 0, %v49
      %v51 = vrot.slane %v46, %v50
      %53 = vst [vmem:[#allocation7] sm:$0xff] %v51
    $region25: #{tpu_custom_call.1} parent=1 // pred_fallthru
      _
    %v54 = vld [vmem:[#allocation7] sm:$0xff]
    %v55 = vld [vmem:[#allocation2] sm:$0xf]
    %v56 = vld [vmem:[#allocation5] sm:$0xf]
    %v57 = vld [vmem:[#allocation5 + $0x4] sm:$0xf]
    %v58 = vld [vmem:[#allocation5 + $0x8] sm:$0xf]
    %v59 = vld [vmem:[#allocation5 + $0xc] sm:$0xf]
    %v60 = vld [vmem:[#allocation5 + $0x10] sm:$0xf]
    %v61 = vld [vmem:[#allocation5 + $0x14] sm:$0xf]
    %v62 = vld [vmem:[#allocation5 + $0x18] sm:$0xf]
    %v63 = vld [vmem:[#allocation5 + $0x1c] sm:$0xf]
    %v64 = vld [vmem:[#allocation5 + $0x20] sm:$0xf]
    %v65 = vld [vmem:[#allocation5 + $0x24] sm:$0xf]
    %v66 = vld [vmem:[#allocation5 + $0x28] sm:$0xf]
    %v67 = vld [vmem:[#allocation5 + $0x2c] sm:$0xf]
    %v68 = vld [vmem:[#allocation5 + $0x30] sm:$0xf]
    %v69 = vld [vmem:[#allocation5 + $0x34] sm:$0xf]
    %v70 = vld [vmem:[#allocation5 + $0x38] sm:$0xf]
    %v71 = vld [vmem:[#allocation5 + $0x3c] sm:$0xf]
    %v88 = vunpack.c.l.b16 %v56
    %v89 = vunpack.c.l.b16 %v57
    %v90 = vunpack.c.l.b16 %v58
    %v91 = vunpack.c.l.b16 %v59
    %v92 = vunpack.c.l.b16 %v60
    %v93 = vunpack.c.l.b16 %v61
    %v94 = vunpack.c.l.b16 %v62
    %v95 = vunpack.c.l.b16 %v63
    %v96 = vunpack.c.l.b16 %v64
    %v97 = vunpack.c.l.b16 %v65
    %v98 = vunpack.c.l.b16 %v66
    %v99 = vunpack.c.l.b16 %v67
    %v100 = vunpack.c.l.b16 %v68
    %v101 = vunpack.c.l.b16 %v69
    %v102 = vunpack.c.l.b16 %v70
    %v103 = vunpack.c.l.b16 %v71
    %v104 = vpack.c.b16 %v89, %v88
    %v105 = vpack.c.b16 %v91, %v90
    %v106 = vpack.c.b16 %v93, %v92
    %v107 = vpack.c.b16 %v95, %v94
    %v108 = vpack.c.b16 %v97, %v96
    %v109 = vpack.c.b16 %v99, %v98
    %v110 = vpack.c.b16 %v101, %v100
    %v111 = vpack.c.b16 %v103, %v102
    %120 = vmatprep.subr.bf16.mxu0 0
    %121 = vmatpush1.bf16.msra.mxu0 %v104
    %122 = vmatprep.subr.bf16.mxu0 0
    %123 = vmatpush1.bf16.msra.mxu0 %v105
    %124 = vmatprep.subr.bf16.mxu0 0
    %125 = vmatpush1.bf16.msra.mxu0 %v106
    %126 = vmatprep.subr.bf16.mxu0 0
    %127 = vmatpush1.bf16.msra.mxu0 %v107
    %128 = vmatprep.subr.bf16.mxu0 0
    %129 = vmatpush1.bf16.msra.mxu0 %v108
    %130 = vmatprep.subr.bf16.mxu0 0
    %131 = vmatpush1.bf16.msra.mxu0 %v109
    %132 = vmatprep.subr.bf16.mxu0 0
    %133 = vmatpush1.bf16.msra.mxu0 %v110
    %134 = vmatprep.subr.bf16.mxu0 0
    %135 = vmatpush1.bf16.msra.mxu0 %v111
    %136 = vmatprep.subr.bf16.mxu0 0
    %137 = vmatpush1.bf16.msra.mxu0 0
    %138 = vmatprep.subr.bf16.mxu0 0
    %139 = vmatpush1.bf16.msra.mxu0 0
    %140 = vmatprep.subr.bf16.mxu0 0
    %141 = vmatpush1.bf16.msra.mxu0 0
    %142 = vmatprep.subr.bf16.mxu0 0
    %143 = vmatpush1.bf16.msra.mxu0 0
    %144 = vmatprep.subr.bf16.mxu0 0
    %145 = vmatpush1.bf16.msra.mxu0 0
    %146 = vmatprep.subr.bf16.mxu0 0
    %147 = vmatpush1.bf16.msra.mxu0 0
    %148 = vmatprep.subr.bf16.mxu0 0
    %149 = vmatpush1.bf16.msra.mxu0 0
    %150 = vmatprep.subr.bf16.mxu0 0
    %151 = vmatpush1.bf16.msra.mxu0 0
    %152 = vmatprep.mubr.bf16.mxu0 0
    %153 = vmatmul.mubr.bf16.gmra.mrb[0].mxu0 %v55
    %v154 = vpop.f32.mrb[0].mxu0
    %v155 = vadd.f32 0.0, %v154
    %v156 = vpop.f32.mrb[0].mxu0
    %v157 = vpop.f32.mrb[0].mxu0
    %v158 = vpop.f32.mrb[0].mxu0
    %159 = vdwg.mxu0
    %v160 = vadd.f32 %v54, %v155
    %161 = vst [vmem:[#allocation7] sm:$0xff] %v160
    // Predicated region
    $region26: #{tpu_custom_call.1} parent=1 // pred_check
      _
    $region27: #{tpu_custom_call.1} parent=1 // pred_check_branch
      %163 = sbr.rel (0) target = $region29
    $region28: #{tpu_custom_call.1} parent=1 // pred_region
      %s165 = ssub.s32 128, 128
      %166 = vsyncadd [#allocation4], %s165
      %s168 = sshll.u32 [#allocation7], 4
      %s169 = int_to_ptr.vmem [resolvable:$true] %s168
      %171 = dma.vmem_to_hbm [thread:$0]  %s169, 128, %s3, [#allocation4]
    $region29: #{tpu_custom_call.1} parent=1 // pred_fallthru
      _
    // Predicated region
    $region30: #{tpu_custom_call.1} parent=1 // pred_check
      _
    $region31: #{tpu_custom_call.1} parent=1 // pred_check_branch
      %173 = sbr.rel (0) target = $region33
    $region32: #{tpu_custom_call.1} parent=1 // pred_region
      %174 = dma.done [#allocation4], 128
    $region33: #{tpu_custom_call.1} parent=1 // pred_fallthru
      _
    %175 = vsyncpa [#allocation3], 1
    %176 = vsyncpa [#allocation6], 1
    %177 = vsyncpa [#allocation4], 1

</llo_original>
